<compile_context>
chip_gen: v7x
topology: tpu7x:2x2x1
jax: 0.10.0
libtpu: 0.0.40
codegen_flags: <defaults>
</compile_context>

<pallas_src>
import functools

import numpy as np

import jax
import jax.numpy as jnp
from jax.experimental import pallas as pl
from jax.experimental.pallas import tpu as pltpu


def _identity_kernel(x_ref, o_ref):
    # Trivial pass-through: copy the VMEM tile unchanged.
    o_ref[...] = x_ref[...]


def _tpu_budget():
    """(max_block_bytes, vmem_limit_bytes) per TPU generation (conservative default)."""
    try:
        kind = jax.devices()[0].device_kind.lower()
    except Exception:  # no devices / unusual backend
        kind = ""
    if "v5" in kind:               # v5e / v5 lite: 16 MiB scoped default
        return 3 * 1024 * 1024, 32 << 20
    if "v6" in kind:               # v6e: 32 MiB scoped default, 128 MiB physical
        return 8 * 1024 * 1024, 64 << 20
    if "v7" in kind:               # v7x: only 64 MiB physical per TC — leave headroom
        return 8 * 1024 * 1024, 48 << 20
    return 3 * 1024 * 1024, 32 << 20


def _copy_slab(slab, max_block_bytes, vmem_limit_bytes):
    """Identity-copy a lane-dense (R, L) slab through VMEM with one big block."""
    R, L = slab.shape
    dtype = slab.dtype
    itemsize = dtype.itemsize
    # Sublane packing: 8 rows for 32-bit, 16 for bf16/fp16, 32 for int8/fp8.
    pack = max(8, 32 // max(itemsize, 1))

    bytes_per_row = L * itemsize
    tile_r = max(1, min(R, max_block_bytes // max(bytes_per_row, 1)))
    if tile_r < R:
        # Keep the row tile aligned to the packed-sublane group size.
        tile_r = max(pack, (tile_r // pack) * pack)
        # Prefer a tile that divides R evenly: every DMA/store stays full-size
        # and unmasked (bounded search so trace time stays negligible).
        t, steps = tile_r, 0
        while t >= pack and R % t != 0 and steps < 512:
            t -= pack
            steps += 1
        if t >= pack and R % t == 0:
            tile_r = t

    grid = (pl.cdiv(R, tile_r),)

    return pl.pallas_call(
        _identity_kernel,
        out_shape=jax.ShapeDtypeStruct((R, L), dtype),
        grid=grid,
        in_specs=[pl.BlockSpec((tile_r, L), lambda i: (i, 0))],
        out_specs=pl.BlockSpec((tile_r, L), lambda i: (i, 0)),
        # Output aliases the input buffer: with jit + donation there is no
        # second HBM allocation for a byte-identical result.
        input_output_aliases={0: 0},
        cost_estimate=pl.CostEstimate(
            flops=0, transcendentals=0,
            bytes_accessed=2 * R * L * itemsize),
        compiler_params=pltpu.CompilerParams(
            dimension_semantics=("parallel",),  # shards rows over v7x's 2 TCs
            vmem_limit_bytes=vmem_limit_bytes,
        ),
    )(slab)


def _passthrough_identity_impl(x):
    """Identity copy of `x` through VMEM using large lane-dense blocks."""
    total = x.size
    if total == 0:
        return x
    max_block_bytes, vmem_limit_bytes = _tpu_budget()

    if total % 128 == 0:
        # Fully lane-aligned: widest power-of-two lane width (<=1024) dividing
        # the element count exactly — no padding, no masked stores.
        lanes = 128
        while lanes * 2 <= 1024 and total % (lanes * 2) == 0:
            lanes *= 2
        slab = x.reshape(total // lanes, lanes)
        out = _copy_slab(slab, max_block_bytes, vmem_limit_bytes)
        return out.reshape(x.shape)

    # Ragged element count: stream the 128-aligned bulk through the slab
    # kernel and carry the (<128-element) tail through the wrapper, instead of
    # a sublane-sparse (1, total) block with masked stores.
    flat = x.reshape(total)
    lanes = 1024 if total >= 1024 else 128
    bulk = (total // lanes) * lanes
    if bulk == 0:
        # Tiny ragged array: nothing worth a kernel launch; identity as-is.
        return x
    bulk_out = _copy_slab(flat[:bulk].reshape(bulk // lanes, lanes),
                          max_block_bytes, vmem_limit_bytes)
    out = jnp.concatenate([bulk_out.reshape(bulk), flat[bulk:]])
    return out.reshape(x.shape)


# jit + donation so input_output_aliases={0:0} is realized (no defensive copy,
# no per-call eager dispatch overhead).  NOTE: the argument buffer is consumed.
passthrough_identity = jax.jit(_passthrough_identity_impl, donate_argnums=0)


def pass_through_module_forward(*args, **kwargs):
    """Faithful port of PassThroughModule.forward: ignore all inputs, return None.

    No Pallas launch here — the reference module performs zero computation, so
    launching (and then discarding) a copy would only burn HBM bandwidth.
    """
    # TODO(synk): forward genuinely returns None in the reference module; there
    # is no computation to lower.
    return None


if __name__ == "__main__":
    key = jax.random.PRNGKey(0)
    # Small NCHW-style input consistent with a typical module input.
    x = jax.random.normal(key, (2, 4, 16, 16), dtype=jnp.float32)

    # Host-side reference copy BEFORE the donated call (x is consumed by it).
    x_host = np.asarray(x)

    # Module-contract check: forward ignores inputs and returns None.
    result = pass_through_module_forward(x, some_kwarg=123)
    assert result is None

    # Exercise the Pallas identity kernel once (donates x) and block on it.
    y = passthrough_identity(x)
    jax.block_until_ready(y)
    assert np.array_equal(np.asarray(y), x_host), "identity copy mismatch"

    print("KERNEL_OK")
</pallas_src>

<mosaic_0001>
module attributes {stable_mosaic.version = 11 : i64} {
  func.func @_identity_kernel(%arg0: i32, %arg1: memref<2x1024xf32, #tpu.memory_space<vmem>>, %arg2: memref<2x1024xf32, #tpu.memory_space<vmem>>) attributes {dimension_semantics = [#tpu.dimension_semantics<parallel>], iteration_bounds = array<i64: 1>, scalar_prefetch = 0 : i64, scratch_operands = 0 : i64, tpu.core_type = #tpu.core_type<tc>, window_params = [{transform_indices = @transform_0, window_bounds = array<i64: 2, 1024>}, {transform_indices = @transform_1, window_bounds = array<i64: 2, 1024>}]} {
    %c0 = arith.constant 0 : index
    %c0_0 = arith.constant 0 : index
    %0 = vector.load %arg1[%c0, %c0_0] : memref<2x1024xf32, #tpu.memory_space<vmem>>, vector<2x1024xf32>
    %c0_1 = arith.constant 0 : index
    %c0_2 = arith.constant 0 : index
    %1 = vector.load %arg2[%c0_1, %c0_2] : memref<2x1024xf32, #tpu.memory_space<vmem>>, vector<2x1024xf32>
    tpu.vector_store %arg2[%c0_1, %c0_2], %0 {strides = array<i32>} : memref<2x1024xf32, #tpu.memory_space<vmem>>, vector<2x1024xf32>,
    return
  }
  func.func @transform_0(%arg0: i32) -> (i32, i32) {
    %c0_i32 = arith.constant 0 : i32
    %c0_i32_0 = arith.constant 0 : i32
    return %arg0, %c0_i32 : i32, i32
  }
  func.func @transform_1(%arg0: i32) -> (i32, i32) {
    %c0_i32 = arith.constant 0 : i32
    %c0_i32_0 = arith.constant 0 : i32
    return %arg0, %c0_i32 : i32, i32
  }
}

</mosaic_0001>

<llo_original>
// kernel: _passthrough_identity_impl.1
$region0: #{_passthrough_identity_impl.1}
  #allocation0 [shape = 'u32[]', space=smem, size = 0x4, offset = 0x4, fixed_abs, tag = 'smem constant byte address 0x4 - core index']
  #allocation1 [shape = 'u32[144,128]{1,0:T(1,128)}', space=vmem, size = 0x12000, scoped, tag = 'internal scratch']
  %s0 = inlined_call_operand.vmem [shape: f32[2,1024], index: 0, kind: input, shape index: {}, may-alias: {0,1}]
  %s1 = inlined_call_operand.vmem [shape: f32[2,1024], index: 1, kind: output, shape index: {}, may-alias: {0,1}]
  %s2 = sld [smem:[#allocation0]]
  $region14: #{_passthrough_identity_impl.1} parent=0
    _
  %s4 = ssub.s32 1, %s2
  %s5 = scalar_select 0, %s4, %s2
  // Predicated region
  $region2: #{_passthrough_identity_impl.1} parent=0 // pred_check
    _
  $region3: #{_passthrough_identity_impl.1} parent=0 // pred_check_branch
    %7 = sbr.rel (0) target = $region5
  $region4: #{_passthrough_identity_impl.1} parent=0 // pred_region
    _
  $region5: #{_passthrough_identity_impl.1} parent=0 // pred_fallthru
    _
  %v8 = vld [vmem:[%s0] sm:$0xff]
  %v9 = vld [vmem:[%s0 + $0x8] sm:$0xff]
  %10 = vst [vmem:[%s1] sm:$0xff] %v8
  %11 = vst [vmem:[%s1 + $0x8] sm:$0xff] %v9
  // Predicated region
  $region6: #{_passthrough_identity_impl.1} parent=0 // pred_check
    _
  $region7: #{_passthrough_identity_impl.1} parent=0 // pred_check_branch
    %13 = sbr.rel (0) target = $region9
  $region8: #{_passthrough_identity_impl.1} parent=0 // pred_region
    _
  $region9: #{_passthrough_identity_impl.1} parent=0 // pred_fallthru
    _
  // Predicated region
  $region10: #{_passthrough_identity_impl.1} parent=0 // pred_check
    _
  $region11: #{_passthrough_identity_impl.1} parent=0 // pred_check_branch
    %15 = sbr.rel (0) target = $region13
  $region12: #{_passthrough_identity_impl.1} parent=0 // pred_region
    _
  $region13: #{_passthrough_identity_impl.1} parent=0 // pred_fallthru
    _

</llo_original>
